<compile_context>
chip_gen: v6e
topology: v6e:2x2x1
jax: 0.10.0
libtpu: 0.0.40
codegen_flags: <defaults>
</compile_context>

<pallas_src>
import functools

import numpy as np

import jax
import jax.numpy as jnp
from jax.experimental import pallas as pl
from jax.experimental.pallas import tpu as pltpu


# ------------------------------ Pallas kernel -------------------------------

def _dca_mix_kernel(x_ref, m_ref, o_ref, *, C):
    """out[c, :] = sum_c' m[c, c'] * x[c', :] for one (batch, hw-tile) block.

    x_ref: (1, C, T)  lane-dense activation tile (T multiple of 128 or full HW)
    m_ref: (1, C, C)  per-batch channel mixing matrix (sigmoid filter taps,
                      channel reflection, gamma scale and beta*x residual all
                      folded in by the wrapper)
    o_ref: (1, C, T)
    """
    x = x_ref[0]          # (C, T)
    m = m_ref[0]          # (C, C)
    if C >= 32:
        # Large channel count: one MXU matmul per tile.
        o_ref[0] = jnp.dot(m, x, preferred_element_type=jnp.float32)
    else:
        # Small C (this module's regime): unrolled broadcast-FMA on the VPU.
        # Exact f32, accumulator initialised from the first term (no zeros+add),
        # and no tiny dot padded up to a full MXU tile.
        acc = m[:, 0:1] * x[0:1, :]
        for cc in range(1, C):
            acc = acc + m[:, cc:cc + 1] * x[cc:cc + 1, :]
        o_ref[0] = acc


# ------------------------------ JAX wrapper ---------------------------------

def _pick_hw_tile(hw, max_tile=2048):
    """Largest lane-dense tile (multiple of 128) that evenly divides hw."""
    if hw <= max_tile:
        return hw
    t = (max_tile // 128) * 128
    while t >= 128:
        if hw % t == 0:
            return t
        t -= 128
    return hw  # fall back to one full-row block (still a legal BlockSpec)


@functools.partial(jax.jit, static_argnames=("kernel",))
def depth_channel_att(x, w_conv, bn_weight, bn_bias, bn_mean, bn_var,
                      gamma, beta, *, kernel):
    N, C, H, W = x.shape
    K = kernel
    p = K // 2
    assert p < C, "reflection pad must be smaller than the channel dim"
    HW = H * W
    eps = 1e-5

    # ---- tiny pooled-filter chain, hoisted out of the kernel (plain JAX) ----
    gap = jnp.mean(x, axis=(2, 3))                                  # (N, C)
    scale = bn_weight * jax.lax.rsqrt(bn_var + eps)                 # (K*C,)
    shift = bn_bias - bn_mean * scale
    # (N,C)x(C,K*C) contraction done as broadcast+reduce: exact f32 and tiny.
    pre = jnp.sum(gap[:, None, :] * w_conv[None, :, :], axis=-1)    # (N, K*C)
    f = jax.nn.sigmoid(pre * scale + shift).reshape(N, K, C)        # tap k, out-chan c

    # ---- fold unfold+reflection, taps, gamma, beta into a (C, C) matrix -----
    # R[k, c, c'] = 1 iff tap k of output channel c reads input channel c'
    # (c' = reflect(c - p + k), PyTorch ReflectionPad semantics).
    c_idx = np.arange(C)
    R = np.zeros((K, C, C), np.float32)
    for k in range(K):
        src = c_idx - p + k
        src = np.where(src < 0, -src, src)
        src = np.where(src >= C, 2 * (C - 1) - src, src)
        R[k, c_idx, src] = 1.0
    # M[n, c, c'] = sum_k f[n, k, c] * R[k, c, c']   (exact elementwise+reduce)
    M = jnp.sum(f[:, :, :, None] * jnp.asarray(R)[None], axis=1)    # (N, C, C)
    g = gamma.reshape(C)
    b = beta.reshape(C)
    # out = gamma*(M @ x) + beta*x  ==  (gamma*M + beta*I) @ x
    M2 = M * g[None, :, None] + jnp.eye(C, dtype=x.dtype)[None] * b[None, :, None]

    # ---- single fused Pallas pass over the activations ----------------------
    x3 = x.reshape(N, C, HW)                    # lane-dense layout (free bitcast)
    tile = _pick_hw_tile(HW)
    out3 = pl.pallas_call(
        functools.partial(_dca_mix_kernel, C=C),
        out_shape=jax.ShapeDtypeStruct((N, C, HW), jnp.float32),
        grid=(N, HW // tile),
        in_specs=[
            pl.BlockSpec((1, C, tile), lambda n, t: (n, 0, t)),
            pl.BlockSpec((1, C, C), lambda n, t: (n, 0, 0)),
        ],
        out_specs=pl.BlockSpec((1, C, tile), lambda n, t: (n, 0, t)),
        compiler_params=pltpu.CompilerParams(
            dimension_semantics=("parallel", "parallel")),
    )(x3, M2)
    return out3.reshape(N, C, H, W)


# --------------------------- pure-JAX reference ------------------------------

def depth_channel_att_ref(x, w_conv, bn_weight, bn_bias, bn_mean, bn_var,
                          gamma, beta, *, kernel):
    N, C, H, W = x.shape
    K = kernel
    p = K // 2
    eps = 1e-5
    gap = jnp.mean(x, axis=(2, 3))                                   # (N, C)
    pre = jnp.sum(gap[:, None, :] * w_conv[None, :, :], axis=-1)     # (N, K*C)
    pre = (pre - bn_mean) / jnp.sqrt(bn_var + eps) * bn_weight + bn_bias
    f = jax.nn.sigmoid(pre).reshape(N, K, C)
    xp = jnp.pad(x, ((0, 0), (p, p), (0, 0), (0, 0)), mode="reflect")
    out = jnp.zeros_like(x)
    for k in range(K):
        out = out + f[:, k, :, None, None] * xp[:, k:k + C]
    return out * gamma[None] + x * beta[None]


# ---------------------------------- main -------------------------------------

if __name__ == "__main__":
    N, dim, H, W = 2, 4, 16, 16
    key = jax.random.PRNGKey(0)

    for kernel in (3, 5):          # module default is 3; 5 exercises deeper reflection
        ks = jax.random.split(jax.random.fold_in(key, kernel), 8)
        x = jax.random.normal(ks[0], (N, dim, H, W), jnp.float32)
        # Conv2d(dim, kernel*dim, 1, bias=False) weight (squeezed to 2-D).
        w_conv = 0.2 * jax.random.normal(ks[1], (kernel * dim, dim), jnp.float32)
        # BatchNorm2d(kernel*dim) inference parameters / running stats.
        bn_weight = 1.0 + 0.1 * jax.random.normal(ks[2], (kernel * dim,), jnp.float32)
        bn_bias = 0.1 * jax.random.normal(ks[3], (kernel * dim,), jnp.float32)
        bn_mean = 0.1 * jax.random.normal(ks[4], (kernel * dim,), jnp.float32)
        bn_var = 0.5 + jnp.abs(jax.random.normal(ks[5], (kernel * dim,), jnp.float32))
        # PyTorch inits gamma=0, beta=1 (output == x); deterministic random values
        # are used here so the attention path actually influences the check.
        gamma = jax.random.normal(ks[6], (dim, 1, 1), jnp.float32)
        beta = jax.random.normal(ks[7], (dim, 1, 1), jnp.float32)

        out = depth_channel_att(x, w_conv, bn_weight, bn_bias, bn_mean, bn_var,
                                gamma, beta, kernel=kernel)
        out = jax.block_until_ready(out)
        ref = depth_channel_att_ref(x, w_conv, bn_weight, bn_bias, bn_mean, bn_var,
                                    gamma, beta, kernel=kernel)
        assert out.shape == (N, dim, H, W) and out.dtype == jnp.float32
        err = float(jnp.max(jnp.abs(out - ref)))
        assert jnp.allclose(out, ref, atol=1e-4, rtol=1e-4), err

    print("KERNEL_OK")
</pallas_src>

<mosaic_0001>
module attributes {stable_mosaic.version = 11 : i64} {
  func.func @_dca_mix_kernel(%arg0: i32, %arg1: i32, %arg2: memref<1x4x256xf32, #tpu.memory_space<vmem>>, %arg3: memref<1x4x4xf32, #tpu.memory_space<vmem>>, %arg4: memref<1x4x256xf32, #tpu.memory_space<vmem>>) attributes {dimension_semantics = [#tpu.dimension_semantics<parallel>, #tpu.dimension_semantics<parallel>], iteration_bounds = array<i64: 2, 1>, scalar_prefetch = 0 : i64, scratch_operands = 0 : i64, tpu.core_type = #tpu.core_type<tc>, window_params = [{transform_indices = @transform_0, window_bounds = array<i64: 1, 4, 256>}, {transform_indices = @transform_1, window_bounds = array<i64: 1, 4, 4>}, {transform_indices = @transform_2, window_bounds = array<i64: 1, 4, 256>}]} {
    %c0 = arith.constant 0 : index
    %c0_0 = arith.constant 0 : index
    %c0_1 = arith.constant 0 : index
    %0 = vector.load %arg2[%c0, %c0_0, %c0_1] : memref<1x4x256xf32, #tpu.memory_space<vmem>>, vector<1x4x256xf32>
    %1 = vector.shape_cast %0 : vector<1x4x256xf32> to vector<4x256xf32>
    %c0_2 = arith.constant 0 : index
    %c0_3 = arith.constant 0 : index
    %c0_4 = arith.constant 0 : index
    %2 = vector.load %arg3[%c0_2, %c0_3, %c0_4] : memref<1x4x4xf32, #tpu.memory_space<vmem>>, vector<1x4x4xf32>
    %3 = vector.shape_cast %2 : vector<1x4x4xf32> to vector<4x4xf32>
    %4 = vector.extract_strided_slice %3 {offsets = [0, 0], sizes = [4, 1], strides = [1, 1]} : vector<4x4xf32> to vector<4x1xf32>
    %5 = vector.extract_strided_slice %1 {offsets = [0, 0], sizes = [1, 256], strides = [1, 1]} : vector<4x256xf32> to vector<1x256xf32>
    %6 = vector.broadcast %4 : vector<4x1xf32> to vector<4x256xf32>
    %7 = vector.broadcast %5 : vector<1x256xf32> to vector<4x256xf32>
    %8 = arith.mulf %6, %7 : vector<4x256xf32>
    %9 = vector.extract_strided_slice %3 {offsets = [0, 1], sizes = [4, 1], strides = [1, 1]} : vector<4x4xf32> to vector<4x1xf32>
    %10 = vector.extract_strided_slice %1 {offsets = [1, 0], sizes = [1, 256], strides = [1, 1]} : vector<4x256xf32> to vector<1x256xf32>
    %11 = vector.broadcast %9 : vector<4x1xf32> to vector<4x256xf32>
    %12 = vector.broadcast %10 : vector<1x256xf32> to vector<4x256xf32>
    %13 = arith.mulf %11, %12 : vector<4x256xf32>
    %14 = arith.addf %8, %13 : vector<4x256xf32>
    %15 = vector.extract_strided_slice %3 {offsets = [0, 2], sizes = [4, 1], strides = [1, 1]} : vector<4x4xf32> to vector<4x1xf32>
    %16 = vector.extract_strided_slice %1 {offsets = [2, 0], sizes = [1, 256], strides = [1, 1]} : vector<4x256xf32> to vector<1x256xf32>
    %17 = vector.broadcast %15 : vector<4x1xf32> to vector<4x256xf32>
    %18 = vector.broadcast %16 : vector<1x256xf32> to vector<4x256xf32>
    %19 = arith.mulf %17, %18 : vector<4x256xf32>
    %20 = arith.addf %14, %19 : vector<4x256xf32>
    %21 = vector.extract_strided_slice %3 {offsets = [0, 3], sizes = [4, 1], strides = [1, 1]} : vector<4x4xf32> to vector<4x1xf32>
    %22 = vector.extract_strided_slice %1 {offsets = [3, 0], sizes = [1, 256], strides = [1, 1]} : vector<4x256xf32> to vector<1x256xf32>
    %23 = vector.broadcast %21 : vector<4x1xf32> to vector<4x256xf32>
    %24 = vector.broadcast %22 : vector<1x256xf32> to vector<4x256xf32>
    %25 = arith.mulf %23, %24 : vector<4x256xf32>
    %26 = arith.addf %20, %25 : vector<4x256xf32>
    %c0_5 = arith.constant 0 : index
    %c0_6 = arith.constant 0 : index
    %c0_7 = arith.constant 0 : index
    %27 = vector.load %arg4[%c0_5, %c0_6, %c0_7] : memref<1x4x256xf32, #tpu.memory_space<vmem>>, vector<1x4x256xf32>
    %28 = vector.shape_cast %27 : vector<1x4x256xf32> to vector<4x256xf32>
    %29 = vector.shape_cast %26 : vector<4x256xf32> to vector<1x4x256xf32>
    tpu.vector_store %arg4[%c0_5, %c0_6, %c0_7], %29 {strides = array<i32>} : memref<1x4x256xf32, #tpu.memory_space<vmem>>, vector<1x4x256xf32>,
    return
  }
  func.func @transform_0(%arg0: i32, %arg1: i32) -> (i32, i32, i32) {
    %c0_i32 = arith.constant 0 : i32
    %c0_i32_0 = arith.constant 0 : i32
    return %arg0, %c0_i32, %arg1 : i32, i32, i32
  }
  func.func @transform_1(%arg0: i32, %arg1: i32) -> (i32, i32, i32) {
    %c0_i32 = arith.constant 0 : i32
    %c0_i32_0 = arith.constant 0 : i32
    %c0_i32_1 = arith.constant 0 : i32
    return %arg0, %c0_i32, %c0_i32_0 : i32, i32, i32
  }
  func.func @transform_2(%arg0: i32, %arg1: i32) -> (i32, i32, i32) {
    %c0_i32 = arith.constant 0 : i32
    %c0_i32_0 = arith.constant 0 : i32
    return %arg0, %c0_i32, %arg1 : i32, i32, i32
  }
}

</mosaic_0001>

<llo_original>
// kernel: depth_channel_att.1
$region0: #{depth_channel_att.1}
  #allocation0 [shape = 'u32[]', space=smem, size = 0x4, offset = 0x4, fixed_abs, tag = 'smem constant byte address 0x4 - core index']
  #allocation1 [shape = 'u32[144,128]{1,0:T(1,128)}', space=vmem, size = 0x12000, scoped, tag = 'internal scratch']
  %s0 = inlined_call_operand.vmem [shape: f32[2,4,256], index: 0, kind: input, shape index: {}]
  %s1 = inlined_call_operand.vmem [shape: f32[2,4,4], index: 1, kind: input, shape index: {}]
  %s2 = inlined_call_operand.vmem [shape: f32[2,4,256], index: 2, kind: output, shape index: {}]
  %s3 = sld [smem:[#allocation0]]
  $region41: #{depth_channel_att.1} parent=0
    _
  %s5 = ssub.s32 1, %s3
  %s6 = scalar_select 0, %s5, %s3
  loop: start=0, step=1, limit=4
  $region2: #{depth_channel_att.1} parent=0 // loop_pre_header
    _
  $region3: #{depth_channel_att.1} parent=0 // loop_header
    %s8 = sphi 0, %s12
    %p9 = scmp.ge.s32.totalorder %s8, 4
    %s15 = sphi 0, %s27
    %s16 = sphi 0, %s23
    %s17 = sphi 0, %s15
    %s18 = sphi 0, %s16
    %s19 = sphi 0, %s17
    %s20 = sphi 0, %s18
    %s32 = sphi 0, %s34
    %s35 = sphi 0, %s32
    %s36 = sphi 0, %s35
    %s52 = sphi 0, %s36
    %s58 = sphi 0, %s60
    %s61 = sphi 0, %s58
    %s62 = sphi 0, %s61
    %s78 = sphi 0, %s62
    %s86 = sphi 0, %s88
    %s89 = sphi 0, %s86
    %s90 = sphi 0, %s89
    %s106 = sphi 0, %s90
  $region4: #{depth_channel_att.1} parent=0 // loop_header_branch
    %11 = sbr.rel (%p9) target = $region8
  $region5: #{depth_channel_att.1} parent=0 // loop_body
    %s13 = ssub.s32 %s8, 1
    %s14 = ssub.s32 %s8, 2
    %s21 = sadd.s32 1, %s16
    %p22 = scmp.ge.s32.totalorder %s21, 1
    %s23 = scalar_select %p22, 0, %s21
    %s24 = sadd.s32 1, %s15
    %s25 = scalar_select %p22, %s24, %s15
    %p26 = scmp.ge.s32.totalorder %s25, 2
    %s27 = scalar_select %p26, 0, %s25
    %s28 = ssub.s32 %s15, %s27
    %s29 = ssub.s32 %s16, %s23
    %s30 = sor.u32 %s28, %s29
    %p31 = scmp.eq.s32.totalorder %s30, 0
    %s33 = sadd.s32 %s32, 1
    %s34 = scalar_select %p31, %s32, %s33
    %p37 = pneg %p31
    %p38 = scmp.eq.s32.totalorder %s8, 1
    %p39 = por %p37, %p38
    %p40 = scmp.ne.s32.totalorder %s32, %s35
    %p41 = scmp.eq.s32.totalorder %s8, 0
    %p42 = por %p40, %p41
    %p43 = scmp.ne.s32.totalorder %s32, %s35
    %p44 = scmp.eq.s32.totalorder %s13, 1
    %p45 = por %p43, %p44
    %p46 = scmp.ne.s32.totalorder %s35, %s36
    %p47 = scmp.eq.s32.totalorder %s13, 0
    %p48 = por %p46, %p47
    %p49 = scmp.ne.s32.totalorder %s35, %s36
    %p50 = scmp.eq.s32.totalorder %s14, 1
    %p51 = por %p49, %p50
    %p53 = scmp.ne.s32.totalorder %s36, %s52
    %p54 = scmp.eq.s32.totalorder %s14, 0
    %p55 = por %p53, %p54
    %s56 = ssub.s32 %s15, %s27
    %p57 = scmp.eq.s32.totalorder %s56, 0
    %s59 = sadd.s32 %s58, 1
    %s60 = scalar_select %p57, %s58, %s59
    %p63 = pneg %p57
    %p64 = scmp.eq.s32.totalorder %s8, 1
    %p65 = por %p63, %p64
    %p66 = scmp.ne.s32.totalorder %s58, %s61
    %p67 = scmp.eq.s32.totalorder %s8, 0
    %p68 = por %p66, %p67
    %p69 = scmp.ne.s32.totalorder %s58, %s61
    %p70 = scmp.eq.s32.totalorder %s13, 1
    %p71 = por %p69, %p70
    %p72 = scmp.ne.s32.totalorder %s61, %s62
    %p73 = scmp.eq.s32.totalorder %s13, 0
    %p74 = por %p72, %p73
    %p75 = scmp.ne.s32.totalorder %s61, %s62
    %p76 = scmp.eq.s32.totalorder %s14, 1
    %p77 = por %p75, %p76
    %p79 = scmp.ne.s32.totalorder %s62, %s78
    %p80 = scmp.eq.s32.totalorder %s14, 0
    %p81 = por %p79, %p80
    %s82 = ssub.s32 %s15, %s27
    %s83 = ssub.s32 %s16, %s23
    %s84 = sor.u32 %s82, %s83
    %p85 = scmp.eq.s32.totalorder %s84, 0
    %s87 = sadd.s32 %s86, 1
    %s88 = scalar_select %p85, %s86, %s87
    %p91 = pneg %p85
    %p92 = scmp.eq.s32.totalorder %s8, 1
    %p93 = por %p91, %p92
    %p94 = scmp.ne.s32.totalorder %s86, %s89
    %p95 = scmp.eq.s32.totalorder %s8, 0
    %p96 = por %p94, %p95
    %p97 = scmp.ne.s32.totalorder %s86, %s89
    %p98 = scmp.eq.s32.totalorder %s13, 1
    %p99 = por %p97, %p98
    %p100 = scmp.ne.s32.totalorder %s89, %s90
    %p101 = scmp.eq.s32.totalorder %s13, 0
    %p102 = por %p100, %p101
    %p103 = scmp.ne.s32.totalorder %s89, %s90
    %p104 = scmp.eq.s32.totalorder %s14, 1
    %p105 = por %p103, %p104
    %p107 = scmp.ne.s32.totalorder %s90, %s106
    %p108 = scmp.eq.s32.totalorder %s14, 0
    %p109 = por %p107, %p108
    %p110 = scmp.le.s32.totalorder 1, %s8
    %p111 = scmp.lt.s32.totalorder %s8, 3
    %p112 = pnand %p110, %p111
    %p113 = pneg %p112
    // Predicated region
    $region9: #{depth_channel_att.1} parent=5 // pred_check
      _
    $region10: #{depth_channel_att.1} parent=5 // pred_check_branch
      %115 = sbr.rel (%p112) target = $region12
    $region11: #{depth_channel_att.1} parent=5 // pred_region
      %s116 = ssub.s32 %s8, 1
    $region12: #{depth_channel_att.1} parent=5 // pred_fallthru
      _
    %p117 = scmp.lt.s32.totalorder %s8, 2
    // Predicated region
    $region13: #{depth_channel_att.1} parent=5 // pred_check
      %p118 = pneg %p117
    $region14: #{depth_channel_att.1} parent=5 // pred_check_branch
      %120 = sbr.rel (%p118) target = $region16
    $region15: #{depth_channel_att.1} parent=5 // pred_region
      // Predicated region
      $region17: #{depth_channel_att.1} parent=15 // pred_check
        %p121 = pneg %p42
      $region18: #{depth_channel_att.1} parent=15 // pred_check_branch
        %123 = sbr.rel (%p121) target = $region20
      $region19: #{depth_channel_att.1} parent=15 // pred_region
        %s124 = smul.u32 2, %s16
        %p125 = scmp.lt.s32.totalorder %s15, 1
        %s126 = scalar_select %p125, %s15, 1
        %p127 = scmp.lt.s32.totalorder %s124, 1
        %s128 = scalar_select %p127, %s124, 1
        %s129 = smul.addr %s126, 2
        %s130 = sadd.s32 %s128, %s129
        %s131 = smul.addr %s130, 4
        %s132 = scalar_lea.vmem %s0, %s131
        %s133 = smul.u32 2, %s16
      $region20: #{depth_channel_att.1} parent=15 // pred_fallthru
        _
      // Predicated region
      $region21: #{depth_channel_att.1} parent=15 // pred_check
        %p134 = pneg %p68
      $region22: #{depth_channel_att.1} parent=15 // pred_check_branch
        %136 = sbr.rel (%p134) target = $region24
      $region23: #{depth_channel_att.1} parent=15 // pred_region
        %p137 = scmp.lt.s32.totalorder %s15, 1
        %s138 = scalar_select %p137, %s15, 1
        %s139 = smul.addr %s138, 4
        %s140 = scalar_lea.vmem %s1, %s139
      $region24: #{depth_channel_att.1} parent=15 // pred_fallthru
        _
    $region16: #{depth_channel_att.1} parent=5 // pred_fallthru
      _
    %p141 = scmp.le.s32.totalorder 1, %s8
    %p142 = scmp.lt.s32.totalorder %s8, 3
    %p143 = pnand %p141, %p142
    %p144 = pneg %p143
    // Predicated region
    $region25: #{depth_channel_att.1} parent=5 // pred_check
      _
    $region26: #{depth_channel_att.1} parent=5 // pred_check_branch
      %146 = sbr.rel (%p143) target = $region28
    $region27: #{depth_channel_att.1} parent=5 // pred_region
      %s147 = ssub.s32 %s8, 1
      %s148 = smul.u32 2, %s18
      %p149 = scmp.lt.s32.totalorder %s17, 1
      %s150 = scalar_select %p149, %s17, 1
      %p151 = scmp.lt.s32.totalorder %s148, 1
      %s152 = scalar_select %p151, %s148, 1
      %s153 = smul.addr %s150, 2
      %s154 = sadd.s32 %s152, %s153
      %s155 = smul.addr %s154, 4
      %s156 = scalar_lea.vmem %s0, %s155
      %p157 = pneg %p48
      %p158 = pneg %p45
      %p159 = scmp.lt.s32.totalorder %s17, 1
      %s160 = scalar_select %p159, %s17, 1
      %s161 = smul.addr %s160, 4
      %s162 = scalar_lea.vmem %s1, %s161
      %p163 = pneg %p74
      %p164 = pneg %p71
      %p165 = pneg %p102
      %p166 = pneg %p99
      %s167 = smul.u32 2, %s18
      %p168 = scmp.lt.s32.totalorder %s17, 1
      %s169 = scalar_select %p168, %s17, 1
      %p170 = scmp.lt.s32.totalorder %s167, 1
      %s171 = scalar_select %p170, %s167, 1
      %s172 = smul.addr %s169, 2
      %s173 = sadd.s32 %s171, %s172
      %s174 = smul.addr %s173, 4
      %s175 = scalar_lea.vmem %s2, %s174
      %s176 = smul.u32 2, %s18
      %p177 = scmp.lt.s32.totalorder %s17, 1
      %s178 = scalar_select %p177, %s17, 1
      %p179 = scmp.lt.s32.totalorder %s176, 1
      %s180 = scalar_select %p179, %s176, 1
      %s181 = smul.addr %s178, 2
      %s182 = sadd.s32 %s180, %s181
      %s183 = smul.addr %s182, 4
      %s184 = scalar_lea.vmem %s0, %s183
      %s185 = smul.u32 2, %s18
      %p186 = scmp.lt.s32.totalorder %s17, 1
      %s187 = scalar_select %p186, %s17, 1
      %s188 = smul.addr %s187, 4
      %s189 = scalar_lea.vmem %s1, %s188
      %s190 = smul.u32 2, %s18
      %p191 = scmp.lt.s32.totalorder %s17, 1
      %s192 = scalar_select %p191, %s17, 1
      %p193 = scmp.lt.s32.totalorder %s190, 1
      %s194 = scalar_select %p193, %s190, 1
      %s195 = smul.addr %s192, 2
      %s196 = sadd.s32 %s194, %s195
      %s197 = smul.addr %s196, 4
      %s198 = scalar_lea.vmem %s2, %s197
      %s199 = smul.u32 2, %s18
      %v200 = vld [vmem:[%s184] sm:$0xff]
      %v201 = vld [vmem:[%s189] sm:$0xf]
      %203 = vset.pattern.permute.xlu0 0
      %204 = vperm.xlu0 %203, %v201
      %v205 = vpop.permute.xlu0 %204
      %v208 = vlaneseq
      %v209 = vshrl.u32 %v208, 7
      %v210 = vsub.s32 0, %v209
      %v211 = vrot.slane %v200, %v210
      %v212 = vlaneseq
      %v213 = vshrl.u32 %v212, 7
      %v214 = vsub.s32 4, %v213
      %v215 = vrot.slane %v200, %v214
      %v218 = vlaneseq
      %v219 = vshrl.u32 %v218, 7
      %v220 = vsub.s32 0, %v219
      %v221 = vrot.slane %v211, %v220
      %v222 = vlaneseq
      %v223 = vshrl.u32 %v222, 7
      %v224 = vsub.s32 0, %v223
      %v225 = vrot.slane %v215, %v224
      %v226 = vmul.f32 %v205, %v221
      %v227 = vmul.f32 %v205, %v225
      %228 = vset.pattern.permute.xlu0 1
      %229 = vperm.xlu0 %228, %v201
      %v230 = vpop.permute.xlu0 %229
      %v232 = vlaneseq
      %v233 = vshrl.u32 %v232, 7
      %v234 = vsub.s32 1, %v233
      %v235 = vrot.slane %v200, %v234
      %v236 = vlaneseq
      %v237 = vshrl.u32 %v236, 7
      %v238 = vsub.s32 5, %v237
      %v239 = vrot.slane %v200, %v238
      %v242 = vlaneseq
      %v243 = vshrl.u32 %v242, 7
      %v244 = vsub.s32 1, %v243
      %v245 = vrot.slane %v235, %v244
      %v246 = vlaneseq
      %v247 = vshrl.u32 %v246, 7
      %v248 = vsub.s32 1, %v247
      %v249 = vrot.slane %v239, %v248
      %v250 = vmul.f32 %v230, %v245
      %v251 = vmul.f32 %v230, %v249
      %v252 = vadd.f32 %v226, %v250
      %v253 = vadd.f32 %v227, %v251
      %254 = vset.pattern.permute.xlu0 2
      %255 = vperm.xlu0 %254, %v201
      %v256 = vpop.permute.xlu0 %255
      %v258 = vlaneseq
      %v259 = vshrl.u32 %v258, 7
      %v260 = vsub.s32 2, %v259
      %v261 = vrot.slane %v200, %v260
      %v262 = vlaneseq
      %v263 = vshrl.u32 %v262, 7
      %v264 = vsub.s32 6, %v263
      %v265 = vrot.slane %v200, %v264
      %v268 = vlaneseq
      %v269 = vshrl.u32 %v268, 7
      %v270 = vsub.s32 2, %v269
      %v271 = vrot.slane %v261, %v270
      %v272 = vlaneseq
      %v273 = vshrl.u32 %v272, 7
      %v274 = vsub.s32 2, %v273
      %v275 = vrot.slane %v265, %v274
      %v276 = vmul.f32 %v256, %v271
      %v277 = vmul.f32 %v256, %v275
      %v278 = vadd.f32 %v252, %v276
      %v279 = vadd.f32 %v253, %v277
      %280 = vset.pattern.permute.xlu0 3
      %281 = vperm.xlu0 %280, %v201
      %v282 = vpop.permute.xlu0 %281
      %v284 = vlaneseq
      %v285 = vshrl.u32 %v284, 7
      %v286 = vsub.s32 3, %v285
      %v287 = vrot.slane %v200, %v286
      %v288 = vlaneseq
      %v289 = vshrl.u32 %v288, 7
      %v290 = vsub.s32 7, %v289
      %v291 = vrot.slane %v200, %v290
      %v294 = vlaneseq
      %v295 = vshrl.u32 %v294, 7
      %v296 = vsub.s32 3, %v295
      %v297 = vrot.slane %v287, %v296
      %v298 = vlaneseq
      %v299 = vshrl.u32 %v298, 7
      %v300 = vsub.s32 3, %v299
      %v301 = vrot.slane %v291, %v300
      %v302 = vmul.f32 %v282, %v297
      %v303 = vmul.f32 %v282, %v301
      %v304 = vadd.f32 %v278, %v302
      %v305 = vadd.f32 %v279, %v303
      %v308 = vcombine.low %v304, %v305
      %310 = vst [vmem:[%s198] sm:$0xff] %v308
      %s311 = smul.u32 2, %s18
      %p312 = scmp.lt.s32.totalorder %s17, 1
      %s313 = scalar_select %p312, %s17, 1
      %p314 = scmp.lt.s32.totalorder %s311, 1
      %s315 = scalar_select %p314, %s311, 1
      %s316 = smul.addr %s313, 2
      %s317 = sadd.s32 %s315, %s316
      %s318 = smul.addr %s317, 4
      %s319 = scalar_lea.vmem %s2, %s318
      // Predicated region
      $region29: #{depth_channel_att.1} parent=27 // pred_check
        %p320 = pneg %p99
      $region30: #{depth_channel_att.1} parent=27 // pred_check_branch
        %322 = sbr.rel (%p320) target = $region32
      $region31: #{depth_channel_att.1} parent=27 // pred_region
        %s323 = smul.u32 2, %s18
      $region32: #{depth_channel_att.1} parent=27 // pred_fallthru
        _
    $region28: #{depth_channel_att.1} parent=5 // pred_fallthru
      _
    %p324 = scmp.le.s32.totalorder 2, %s8
    // Predicated region
    $region33: #{depth_channel_att.1} parent=5 // pred_check
      %p325 = pneg %p324
    $region34: #{depth_channel_att.1} parent=5 // pred_check_branch
      %327 = sbr.rel (%p325) target = $region36
    $region35: #{depth_channel_att.1} parent=5 // pred_region
      %s328 = ssub.s32 %s8, 2
      // Predicated region
      $region37: #{depth_channel_att.1} parent=35 // pred_check
        %p329 = pneg %p105
      $region38: #{depth_channel_att.1} parent=35 // pred_check_branch
        %331 = sbr.rel (%p329) target = $region40
      $region39: #{depth_channel_att.1} parent=35 // pred_region
        %s332 = smul.u32 2, %s20
        %p333 = scmp.lt.s32.totalorder %s19, 1
        %s334 = scalar_select %p333, %s19, 1
        %p335 = scmp.lt.s32.totalorder %s332, 1
        %s336 = scalar_select %p335, %s332, 1
        %s337 = smul.addr %s334, 2
        %s338 = sadd.s32 %s336, %s337
        %s339 = smul.addr %s338, 4
        %s340 = scalar_lea.vmem %s2, %s339
      $region40: #{depth_channel_att.1} parent=35 // pred_fallthru
        _
    $region36: #{depth_channel_att.1} parent=5 // pred_fallthru
      _
  $region6: #{depth_channel_att.1} parent=0 // loop_footer
    %s12 = sadd.s32 1, %s8
  $region7: #{depth_channel_att.1} parent=0 // loop_footer_branch
    %7 = sbr.rel target = $region3
  $region8: #{depth_channel_att.1} parent=0 // loop_exit
    _

</llo_original>
